<compile_context>
chip_gen: v5e
topology: v5e:2x2
jax: 0.10.0
libtpu: 0.0.40
codegen_flags: <defaults>
</compile_context>

<pallas_src>
import jax
import jax.numpy as jnp
from jax.experimental import pallas as pl
from jax.experimental.pallas import tpu as pltpu


def _vanilla_attention_kernel(x_ref, w1_ref, b1_ref, w2_ref, hid_ref, wts_ref):
    tb, s, h = x_ref.shape                 # block shape: (TB, S, H)
    x = x_ref[...]                         # (TB, S, H)
    x_flat = x.reshape(tb * s, h)          # (TB*S, H); free relayout when S % 8 == 0

    # Projection: Linear(H, A) -> ReLU -> Linear(A, 1), fused over the tile.
    hdn = jnp.dot(x_flat, w1_ref[...], preferred_element_type=jnp.float32)
    hdn = jnp.maximum(hdn + b1_ref[...], 0.0)                            # (TB*S, A)
    e = jnp.dot(hdn, w2_ref[...], preferred_element_type=jnp.float32)    # (TB*S, 1)
    # b2 is intentionally omitted: a scalar added to every energy cancels in softmax.

    # One repack per tile -> S lands on the lane axis (matches the (TB, S) output
    # and keeps exp / max / sum lane-dense).
    e_ts = e.reshape(tb, s)                                              # (TB, S)

    # Softmax over S in f32 (max-subtracted).
    m = jnp.max(e_ts, axis=-1, keepdims=True)                            # (TB, 1)
    p = jnp.exp(e_ts - m)                                                # (TB, S)
    denom = jnp.sum(p, axis=-1, keepdims=True)                           # (TB, 1)
    inv = pl.reciprocal(denom, approx=True)                              # EUP slot
    inv = inv * (2.0 - denom * inv)        # one Newton step -> ~f32 accuracy
    w_ts = p * inv                                                       # (TB, S)

    wts_ref[...] = w_ts.astype(wts_ref.dtype)

    # Weighted sum over S: broadcast the per-(b, s) weight across the H lanes
    # (VPU) and reduce over the S sublanes (XLU).  O(TB*S*H) work, no TB^2
    # intermediates, both units are off the critical (DMA) path.
    xw = x.astype(jnp.float32) * w_ts[:, :, None]                        # (TB, S, H)
    hid = jnp.sum(xw, axis=1)                                            # (TB, H)
    hid_ref[...] = hid.astype(hid_ref.dtype)


def _pick_batch_tile(B, S, H, itemsize, vmem_budget_bytes):
    """Pick the batch tile: biggest multiple of 8 whose x-block fits the budget,
    capped at the (sublane-rounded) batch and a sanity ceiling."""
    per_row = max(S * H * itemsize, 1)
    tb = vmem_budget_bytes // per_row
    tb = max(8, (tb // 8) * 8)              # sublane rule for (TB, H)/(TB, S) blocks
    b_ceil = 8 * ((B + 7) // 8)
    return int(max(8, min(tb, b_ceil, 512)))


def vanilla_attention(x, w1, b1, w2, b2=None, *, tb=None,
                      vmem_budget_bytes=2 * 1024 * 1024):
    """x: (B, S, H); w1: (H, A); b1: (A,); w2: (A, 1); b2: (1,).

    `tb` = batch-tile size per grid step (auto-chosen if None so that one x
    block stays within `vmem_budget_bytes`; with double buffering plus f32
    working copies the peak stays well inside the default scoped-VMEM limits
    on v5e/v6e/v7x).  The batch is zero-padded up to a multiple of the tile.
    """
    del b2  # softmax(e + c) == softmax(e): the final scalar bias cancels exactly.

    B, S, H = x.shape
    A = w1.shape[1]
    itemsize = jnp.dtype(x.dtype).itemsize

    if tb is None:
        tb = _pick_batch_tile(B, S, H, itemsize, vmem_budget_bytes)
    else:
        tb = max(8, 8 * ((int(tb) + 7) // 8))

    b_pad = tb * ((B + tb - 1) // tb)
    if b_pad != B:
        # Zero rows give uniform, finite softmax weights; sliced off below.
        x = jnp.pad(x, ((0, b_pad - B), (0, 0), (0, 0)))

    b1_2d = b1.reshape(1, A)

    hidden_states, weights = pl.pallas_call(
        _vanilla_attention_kernel,
        out_shape=(
            jax.ShapeDtypeStruct((b_pad, H), x.dtype),   # hidden_states
            jax.ShapeDtypeStruct((b_pad, S), x.dtype),   # weights
        ),
        grid_spec=pltpu.PrefetchScalarGridSpec(
            num_scalar_prefetch=0,
            grid=(b_pad // tb,),
            in_specs=[
                pl.BlockSpec((tb, S, H), lambda b: (b, 0, 0)),   # x (batch tile)
                pl.BlockSpec((H, A), lambda b: (0, 0)),          # w1 (grid-invariant)
                pl.BlockSpec((1, A), lambda b: (0, 0)),          # b1
                pl.BlockSpec((A, 1), lambda b: (0, 0)),          # w2
            ],
            out_specs=[
                pl.BlockSpec((tb, H), lambda b: (b, 0)),         # hidden_states
                pl.BlockSpec((tb, S), lambda b: (b, 0)),         # weights
            ],
        ),
        compiler_params=pltpu.CompilerParams(
            dimension_semantics=("parallel",),
            vmem_limit_bytes=32 * 1024 * 1024),
    )(x, w1, b1_2d, w2)

    if b_pad != B:
        hidden_states = hidden_states[:B]
        weights = weights[:B]
    return hidden_states, weights


def _reference(x, w1, b1, w2, b2):
    # Pure-JAX reference mirroring the PyTorch forward.
    h = jnp.maximum(jnp.einsum("bsh,ha->bsa", x, w1) + b1, 0.0)
    energy = jnp.einsum("bsa,ao->bso", h, w2) + b2       # (B, S, 1)
    weights = jax.nn.softmax(energy[..., 0], axis=-1)    # (B, S)
    hidden = jnp.sum(x * weights[..., None], axis=-2)    # (B, H)
    return hidden, weights


if __name__ == "__main__":
    B, S, H, A = 16, 8, 32, 16   # batch, seq, hidden_dim, attn_dim

    key = jax.random.PRNGKey(0)
    kx, k1, k2, k3, k4 = jax.random.split(key, 5)

    x = jax.random.normal(kx, (B, S, H), dtype=jnp.float32)

    # Deterministic parameter init (shapes from nn.Linear(hidden_dim, attn_dim)
    # and nn.Linear(attn_dim, 1)).
    lim1 = 1.0 / (H ** 0.5)
    lim2 = 1.0 / (A ** 0.5)
    w1 = jax.random.uniform(k1, (H, A), minval=-lim1, maxval=lim1, dtype=jnp.float32)
    b1 = jax.random.uniform(k2, (A,), minval=-lim1, maxval=lim1, dtype=jnp.float32)
    w2 = jax.random.uniform(k3, (A, 1), minval=-lim2, maxval=lim2, dtype=jnp.float32)
    b2 = jax.random.uniform(k4, (1,), minval=-lim2, maxval=lim2, dtype=jnp.float32)

    hidden, weights = vanilla_attention(x, w1, b1, w2, b2)
    jax.block_until_ready((hidden, weights))

    ref_hidden, ref_weights = _reference(x, w1, b1, w2, b2)
    assert hidden.shape == (B, H) and weights.shape == (B, S)
    assert jnp.allclose(hidden, ref_hidden, atol=1e-4, rtol=1e-4)
    assert jnp.allclose(weights, ref_weights, atol=1e-4, rtol=1e-4)

    print("KERNEL_OK")
</pallas_src>

<mosaic_0001>
module attributes {stable_mosaic.version = 11 : i64} {
  func.func @_vanilla_attention_kernel(%arg0: i32, %arg1: memref<16x8x32xf32, #tpu.memory_space<vmem>>, %arg2: memref<32x16xf32, #tpu.memory_space<vmem>>, %arg3: memref<1x16xf32, #tpu.memory_space<vmem>>, %arg4: memref<16x1xf32, #tpu.memory_space<vmem>>, %arg5: memref<16x32xf32, #tpu.memory_space<vmem>>, %arg6: memref<16x8xf32, #tpu.memory_space<vmem>>) attributes {dimension_semantics = [#tpu.dimension_semantics<parallel>], iteration_bounds = array<i64: 1>, scalar_prefetch = 0 : i64, scratch_operands = 0 : i64, tpu.core_type = #tpu.core_type<tc>, window_params = [{transform_indices = @transform_0, window_bounds = array<i64: 16, 8, 32>}, {pipeline_mode = #tpu.pipeline_mode<synchronous>, transform_indices = @transform_1, window_bounds = array<i64: 32, 16>}, {pipeline_mode = #tpu.pipeline_mode<synchronous>, transform_indices = @transform_2, window_bounds = array<i64: 1, 16>}, {pipeline_mode = #tpu.pipeline_mode<synchronous>, transform_indices = @transform_3, window_bounds = array<i64: 16, 1>}, {transform_indices = @transform_4, window_bounds = array<i64: 16, 32>}, {transform_indices = @transform_5, window_bounds = array<i64: 16, 8>}]} {
    %c0 = arith.constant 0 : index
    %c0_0 = arith.constant 0 : index
    %c0_1 = arith.constant 0 : index
    %0 = vector.load %arg1[%c0, %c0_0, %c0_1] : memref<16x8x32xf32, #tpu.memory_space<vmem>>, vector<16x8x32xf32>
    %1 = vector.shape_cast %0 : vector<16x8x32xf32> to vector<128x32xf32>
    %c0_2 = arith.constant 0 : index
    %c0_3 = arith.constant 0 : index
    %2 = vector.load %arg2[%c0_2, %c0_3] : memref<32x16xf32, #tpu.memory_space<vmem>>, vector<32x16xf32>
    %cst = arith.constant dense<0.000000e+00> : vector<128x16xf32>
    %3 = tpu.matmul %1, %2, %cst {dimension_numbers = #tpu.dot_dimension_numbers<[1], [0], [0], [1], [0, 0, 1, 1], [], []>} : vector<128x32xf32>, vector<32x16xf32>, vector<128x16xf32> -> vector<128x16xf32>
    %c0_4 = arith.constant 0 : index
    %c0_5 = arith.constant 0 : index
    %4 = vector.load %arg3[%c0_4, %c0_5] : memref<1x16xf32, #tpu.memory_space<vmem>>, vector<1x16xf32>
    %5 = vector.broadcast %4 : vector<1x16xf32> to vector<128x16xf32>
    %6 = arith.addf %3, %5 : vector<128x16xf32>
    %cst_6 = arith.constant 0.000000e+00 : f32
    %7 = vector.broadcast %cst_6 : f32 to vector<128x16xf32>
    %8 = arith.maximumf %6, %7 : vector<128x16xf32>
    %c0_7 = arith.constant 0 : index
    %c0_8 = arith.constant 0 : index
    %9 = vector.load %arg4[%c0_7, %c0_8] : memref<16x1xf32, #tpu.memory_space<vmem>>, vector<16x1xf32>
    %cst_9 = arith.constant dense<0.000000e+00> : vector<128x1xf32>
    %10 = tpu.matmul %8, %9, %cst_9 {dimension_numbers = #tpu.dot_dimension_numbers<[1], [0], [0], [1], [0, 0, 1, 1], [], []>} : vector<128x16xf32>, vector<16x1xf32>, vector<128x1xf32> -> vector<128x1xf32>
    %11 = vector.shape_cast %10 : vector<128x1xf32> to vector<16x8xf32>
    %cst_10 = arith.constant dense<0xFF800000> : vector<16xf32>
    %12 = vector.multi_reduction <maximumf>, %11, %cst_10 [1] : vector<16x8xf32> to vector<16xf32>
    %13 = vector.shape_cast %12 : vector<16xf32> to vector<16x1xf32>
    %14 = vector.broadcast %13 : vector<16x1xf32> to vector<16x8xf32>
    %15 = arith.subf %11, %14 : vector<16x8xf32>
    %16 = math.exp %15 : vector<16x8xf32>
    %cst_11 = arith.constant dense<0.000000e+00> : vector<16xf32>
    %17 = vector.multi_reduction <add>, %16, %cst_11 [1] : vector<16x8xf32> to vector<16xf32>
    %18 = vector.shape_cast %17 : vector<16xf32> to vector<16x1xf32>
    %19 = tpu.reciprocal %18 {approx = true} : vector<16x1xf32> -> vector<16x1xf32>
    %20 = arith.mulf %18, %19 : vector<16x1xf32>
    %cst_12 = arith.constant 2.000000e+00 : f32
    %21 = vector.broadcast %cst_12 : f32 to vector<16x1xf32>
    %22 = arith.subf %21, %20 : vector<16x1xf32>
    %23 = arith.mulf %19, %22 : vector<16x1xf32>
    %24 = vector.broadcast %23 : vector<16x1xf32> to vector<16x8xf32>
    %25 = arith.mulf %16, %24 : vector<16x8xf32>
    %c0_13 = arith.constant 0 : index
    %c0_14 = arith.constant 0 : index
    %26 = vector.load %arg6[%c0_13, %c0_14] : memref<16x8xf32, #tpu.memory_space<vmem>>, vector<16x8xf32>
    tpu.vector_store %arg6[%c0_13, %c0_14], %25 {strides = array<i32>} : memref<16x8xf32, #tpu.memory_space<vmem>>, vector<16x8xf32>,
    %27 = vector.shape_cast %25 : vector<16x8xf32> to vector<16x8x1xf32>
    %28 = vector.broadcast %27 : vector<16x8x1xf32> to vector<16x8x32xf32>
    %29 = arith.mulf %0, %28 : vector<16x8x32xf32>
    %cst_15 = arith.constant dense<0.000000e+00> : vector<16x32xf32>
    %30 = vector.multi_reduction <add>, %29, %cst_15 [1] : vector<16x8x32xf32> to vector<16x32xf32>
    %c0_16 = arith.constant 0 : index
    %c0_17 = arith.constant 0 : index
    %31 = vector.load %arg5[%c0_16, %c0_17] : memref<16x32xf32, #tpu.memory_space<vmem>>, vector<16x32xf32>
    tpu.vector_store %arg5[%c0_16, %c0_17], %30 {strides = array<i32>} : memref<16x32xf32, #tpu.memory_space<vmem>>, vector<16x32xf32>,
    return
  }
  func.func @transform_0(%arg0: i32) -> (i32, i32, i32) {
    %c0_i32 = arith.constant 0 : i32
    %c0_i32_0 = arith.constant 0 : i32
    %c0_i32_1 = arith.constant 0 : i32
    return %arg0, %c0_i32, %c0_i32_0 : i32, i32, i32
  }
  func.func @transform_1(%arg0: i32) -> (i32, i32) {
    %c0_i32 = arith.constant 0 : i32
    %c0_i32_0 = arith.constant 0 : i32
    %c0_i32_1 = arith.constant 0 : i32
    return %c0_i32, %c0_i32_0 : i32, i32
  }
  func.func @transform_2(%arg0: i32) -> (i32, i32) {
    %c0_i32 = arith.constant 0 : i32
    %c0_i32_0 = arith.constant 0 : i32
    %c0_i32_1 = arith.constant 0 : i32
    return %c0_i32, %c0_i32_0 : i32, i32
  }
  func.func @transform_3(%arg0: i32) -> (i32, i32) {
    %c0_i32 = arith.constant 0 : i32
    %c0_i32_0 = arith.constant 0 : i32
    %c0_i32_1 = arith.constant 0 : i32
    return %c0_i32, %c0_i32_0 : i32, i32
  }
  func.func @transform_4(%arg0: i32) -> (i32, i32) {
    %c0_i32 = arith.constant 0 : i32
    %c0_i32_0 = arith.constant 0 : i32
    return %arg0, %c0_i32 : i32, i32
  }
  func.func @transform_5(%arg0: i32) -> (i32, i32) {
    %c0_i32 = arith.constant 0 : i32
    %c0_i32_0 = arith.constant 0 : i32
    return %arg0, %c0_i32 : i32, i32
  }
}

</mosaic_0001>

<llo_original>
// kernel: tpu_custom_call.1
$region0: #{tpu_custom_call.1}
  #allocation0 [shape = 'u32[]', space=smem, size = 0x4, offset = 0x4, fixed_abs, tag = 'smem constant byte address 0x4 - core index']
  #allocation1 [shape = 'u32[72,128]{1,0:T(1,128)}', space=vmem, size = 0x9000, scoped, tag = 'internal scratch']
  %s0 = inlined_call_operand.hbm [shape: f32[16,8,32], index: 0, kind: input, shape index: {}]
  %s1 = inlined_call_operand.vmem [shape: f32[32,16], index: 1, kind: input, shape index: {}]
  %s2 = inlined_call_operand.vmem [shape: f32[1,16], index: 2, kind: input, shape index: {}]
  %s3 = inlined_call_operand.vmem [shape: f32[16,1], index: 3, kind: input, shape index: {}]
  %s4 = inlined_call_operand.hbm [shape: f32[16,32], index: 4, kind: output, shape index: {0}]
  %s5 = inlined_call_operand.vmem [shape: f32[16,8], index: 5, kind: output, shape index: {1}]
  %6 = xla_tuple %s4, %s5
  %s7 = sld [smem:[#allocation0]]
  $region38: #{tpu_custom_call.1} parent=0
    _
  %s9 = ssub.s32 1, %s7
  %s10 = scalar_select 0, %s9, %s7
  $region1: #{tpu_custom_call.1} parent=0
    #allocation2 [shape = 'u8[65536]{0}', space=vmem, size = 0x10000, scoped, tag = 'input window, operand 0, single buffered']
    #allocation3 [shape = 's32[1]{0}', space=sflag, size = 0x4, scoped, tag = 'scoped memory for tpu_custom_call.1']
    #allocation4 [shape = 's32[1]{0}', space=sflag, size = 0x4, scoped, tag = 'scoped memory for tpu_custom_call.1']
    #allocation5 [shape = 'u8[8192]{0}', space=vmem, size = 0x2000, scoped, tag = 'output window, operand 0, single buffered']
    %11 = vsyncpa [#allocation3], 0
    %12 = vsyncpa [#allocation4], 0
    // Predicated region
    $region2: #{tpu_custom_call.1} parent=1 // pred_check
      _
    $region3: #{tpu_custom_call.1} parent=1 // pred_check_branch
      %14 = sbr.rel (0) target = $region5
    $region4: #{tpu_custom_call.1} parent=1 // pred_region
      %16 = vsyncadd [#allocation3], 0
      %s17 = sshll.u32 %s0, 4
      %s18 = int_to_ptr.hbm [resolvable:$true] %s17
      %s19 = sshll.u32 [#allocation2], 4
      %s20 = int_to_ptr.vmem [resolvable:$true] %s19
      %25 = dma.hbm_to_vmem [thread:$0]  %s18, 2048, %s20, [#allocation3], 128, 128, 8
    $region5: #{tpu_custom_call.1} parent=1 // pred_fallthru
      _
    // Predicated region
    $region6: #{tpu_custom_call.1} parent=1 // pred_check
      _
    $region7: #{tpu_custom_call.1} parent=1 // pred_check_branch
      %27 = sbr.rel (0) target = $region9
    $region8: #{tpu_custom_call.1} parent=1 // pred_region
      _
    $region9: #{tpu_custom_call.1} parent=1 // pred_fallthru
      _
    // Predicated region
    $region10: #{tpu_custom_call.1} parent=1 // pred_check
      _
    $region11: #{tpu_custom_call.1} parent=1 // pred_check_branch
      %29 = sbr.rel (0) target = $region13
    $region12: #{tpu_custom_call.1} parent=1 // pred_region
      _
    $region13: #{tpu_custom_call.1} parent=1 // pred_fallthru
      _
    // Predicated region
    $region14: #{tpu_custom_call.1} parent=1 // pred_check
      _
    $region15: #{tpu_custom_call.1} parent=1 // pred_check_branch
      %31 = sbr.rel (0) target = $region17
    $region16: #{tpu_custom_call.1} parent=1 // pred_region
      _
    $region17: #{tpu_custom_call.1} parent=1 // pred_fallthru
      _
    // Predicated region
    $region18: #{tpu_custom_call.1} parent=1 // pred_check
      _
    $region19: #{tpu_custom_call.1} parent=1 // pred_check_branch
      %33 = sbr.rel (0) target = $region21
    $region20: #{tpu_custom_call.1} parent=1 // pred_region
      %35 = dma.done [#allocation3], 2048
    $region21: #{tpu_custom_call.1} parent=1 // pred_fallthru
      _
    %v36 = vld [vmem:[#allocation2] sm:$0xff]
    %v37 = vld [vmem:[#allocation2 + $0x8] sm:$0xff]
    %v38 = vld [vmem:[#allocation2 + $0x10] sm:$0xff]
    %v39 = vld [vmem:[#allocation2 + $0x18] sm:$0xff]
    %v40 = vld [vmem:[#allocation2 + $0x20] sm:$0xff]
    %v41 = vld [vmem:[#allocation2 + $0x28] sm:$0xff]
    %v42 = vld [vmem:[#allocation2 + $0x30] sm:$0xff]
    %v43 = vld [vmem:[#allocation2 + $0x38] sm:$0xff]
    %v44 = vld [vmem:[#allocation2 + $0x40] sm:$0xff]
    %v45 = vld [vmem:[#allocation2 + $0x48] sm:$0xff]
    %v46 = vld [vmem:[#allocation2 + $0x50] sm:$0xff]
    %v47 = vld [vmem:[#allocation2 + $0x58] sm:$0xff]
    %v48 = vld [vmem:[#allocation2 + $0x60] sm:$0xff]
    %v49 = vld [vmem:[#allocation2 + $0x68] sm:$0xff]
    %v50 = vld [vmem:[#allocation2 + $0x70] sm:$0xff]
    %v51 = vld [vmem:[#allocation2 + $0x78] sm:$0xff]
    %v52 = vld [vmem:[%s1] sm:$0xff]
    %v53 = vld [vmem:[%s1 + $0x8] sm:$0xff]
    %v54 = vld [vmem:[%s1 + $0x10] sm:$0xff]
    %v55 = vld [vmem:[%s1 + $0x18] sm:$0xff]
    %v56 = vld [vmem:[%s2] sm:$0x1]
    %v58 = vperm.slane %v56, 0
    %vm60 = vcmask 261120
    %v62 = vsel %vm60, %v36, 0
    %v65 = vsel %vm60, %v37, 0
    %v68 = vsel %vm60, %v38, 0
    %v71 = vsel %vm60, %v39, 0
    %v74 = vsel %vm60, %v40, 0
    %v77 = vsel %vm60, %v41, 0
    %v80 = vsel %vm60, %v42, 0
    %v83 = vsel %vm60, %v43, 0
    %v86 = vsel %vm60, %v44, 0
    %v89 = vsel %vm60, %v45, 0
    %v92 = vsel %vm60, %v46, 0
    %v95 = vsel %vm60, %v47, 0
    %v98 = vsel %vm60, %v48, 0
    %v101 = vsel %vm60, %v49, 0
    %v104 = vsel %vm60, %v50, 0
    %v107 = vsel %vm60, %v51, 0
    %109 = vmatpush.msra.mxu0 0.0
    %110 = vmatpush.msra.mxu0 0.0
    %111 = vmatpush.msra.mxu0 0.0
    %112 = vmatpush.msra.mxu0 0.0
    %113 = vmatpush.msra.mxu0 0.0
    %114 = vmatpush.msra.mxu0 0.0
    %115 = vmatpush.msra.mxu0 0.0
    %116 = vmatpush.msra.mxu0 0.0
    %117 = vmatpush.msra.mxu0 0.0
    %118 = vmatpush.msra.mxu0 0.0
    %119 = vmatpush.msra.mxu0 0.0
    %120 = vmatpush.msra.mxu0 0.0
    %121 = vmatpush.msra.mxu0 %v55
    %122 = vmatpush.msra.mxu0 %v54
    %123 = vmatpush.msra.mxu0 %v53
    %124 = vmatpush.msra.mxu0 %v52
    %125 = vmatmul.f32.gmra.mxu0 %v62
    %v126 = vpop.f32.mrf.mxu0
    %v127 = vadd.f32 %v58, %v126
    %128 = vmatmul.f32.gmra.mxu0 %v65
    %v129 = vpop.f32.mrf.mxu0
    %v130 = vadd.f32 %v58, %v129
    %131 = vmatmul.f32.gmra.mxu0 %v68
    %v132 = vpop.f32.mrf.mxu0
    %v133 = vadd.f32 %v58, %v132
    %134 = vmatmul.f32.gmra.mxu0 %v71
    %v135 = vpop.f32.mrf.mxu0
    %v136 = vadd.f32 %v58, %v135
    %137 = vmatmul.f32.gmra.mxu0 %v74
    %v138 = vpop.f32.mrf.mxu0
    %v139 = vadd.f32 %v58, %v138
    %140 = vmatmul.f32.gmra.mxu0 %v77
    %v141 = vpop.f32.mrf.mxu0
    %v142 = vadd.f32 %v58, %v141
    %143 = vmatmul.f32.gmra.mxu0 %v80
    %v144 = vpop.f32.mrf.mxu0
    %v145 = vadd.f32 %v58, %v144
    %146 = vmatmul.f32.gmra.mxu0 %v83
    %v147 = vpop.f32.mrf.mxu0
    %v148 = vadd.f32 %v58, %v147
    %149 = vmatmul.f32.gmra.mxu0 %v86
    %v150 = vpop.f32.mrf.mxu0
    %v151 = vadd.f32 %v58, %v150
    %152 = vmatmul.f32.gmra.mxu0 %v89
    %v153 = vpop.f32.mrf.mxu0
    %v154 = vadd.f32 %v58, %v153
    %155 = vmatmul.f32.gmra.mxu0 %v92
    %v156 = vpop.f32.mrf.mxu0
    %v157 = vadd.f32 %v58, %v156
    %158 = vmatmul.f32.gmra.mxu0 %v95
    %v159 = vpop.f32.mrf.mxu0
    %v160 = vadd.f32 %v58, %v159
    %161 = vmatmul.f32.gmra.mxu0 %v98
    %v162 = vpop.f32.mrf.mxu0
    %v163 = vadd.f32 %v58, %v162
    %164 = vmatmul.f32.gmra.mxu0 %v101
    %v165 = vpop.f32.mrf.mxu0
    %v166 = vadd.f32 %v58, %v165
    %167 = vmatmul.f32.gmra.mxu0 %v104
    %v168 = vpop.f32.mrf.mxu0
    %v169 = vadd.f32 %v58, %v168
    %170 = vmatmul.f32.gmra.mxu0 %v107
    %v171 = vpop.f32.mrf.mxu0
    %v172 = vadd.f32 %v58, %v171
    %173 = vdwg.mxu0
    %v174 = vmax.f32 %v127, 0.0
    %v175 = vmax.f32 %v130, 0.0
    %v176 = vmax.f32 %v133, 0.0
    %v177 = vmax.f32 %v136, 0.0
    %v178 = vmax.f32 %v139, 0.0
    %v179 = vmax.f32 %v142, 0.0
    %v180 = vmax.f32 %v145, 0.0
    %v181 = vmax.f32 %v148, 0.0
    %v182 = vmax.f32 %v151, 0.0
    %v183 = vmax.f32 %v154, 0.0
    %v184 = vmax.f32 %v157, 0.0
    %v185 = vmax.f32 %v160, 0.0
    %v186 = vmax.f32 %v163, 0.0
    %v187 = vmax.f32 %v166, 0.0
    %v188 = vmax.f32 %v169, 0.0
    %v189 = vmax.f32 %v172, 0.0
    %v190 = vld [vmem:[%s3] sm:$0xff]
    %v191 = vld [vmem:[%s3 + $0x8] sm:$0xff]
    %vm192 = vcmask 130048
    %v194 = vsel %vm192, %v174, 0
    %v197 = vsel %vm192, %v175, 0
    %v200 = vsel %vm192, %v176, 0
    %v203 = vsel %vm192, %v177, 0
    %v206 = vsel %vm192, %v178, 0
    %v209 = vsel %vm192, %v179, 0
    %v212 = vsel %vm192, %v180, 0
    %v215 = vsel %vm192, %v181, 0
    %v218 = vsel %vm192, %v182, 0
    %v221 = vsel %vm192, %v183, 0
    %v224 = vsel %vm192, %v184, 0
    %v227 = vsel %vm192, %v185, 0
    %v230 = vsel %vm192, %v186, 0
    %v233 = vsel %vm192, %v187, 0
    %v236 = vsel %vm192, %v188, 0
    %v239 = vsel %vm192, %v189, 0
    %241 = vmatpush.msra.mxu0 0.0
    %242 = vmatpush.msra.mxu0 0.0
    %243 = vmatpush.msra.mxu0 0.0
    %244 = vmatpush.msra.mxu0 0.0
    %245 = vmatpush.msra.mxu0 0.0
    %246 = vmatpush.msra.mxu0 0.0
    %247 = vmatpush.msra.mxu0 0.0
    %248 = vmatpush.msra.mxu0 0.0
    %249 = vmatpush.msra.mxu0 0.0
    %250 = vmatpush.msra.mxu0 0.0
    %251 = vmatpush.msra.mxu0 0.0
    %252 = vmatpush.msra.mxu0 0.0
    %253 = vmatpush.msra.mxu0 0.0
    %254 = vmatpush.msra.mxu0 0.0
    %255 = vmatpush.msra.mxu0 %v191
    %256 = vmatpush.msra.mxu0 %v190
    %257 = vmatmul.f32.gmra.mxu0 %v194
    %v258 = vpop.f32.mrf.mxu0
    %v259 = vadd.f32 0.0, %v258
    %260 = vmatmul.f32.gmra.mxu0 %v197
    %v261 = vpop.f32.mrf.mxu0
    %v262 = vadd.f32 0.0, %v261
    %263 = vmatmul.f32.gmra.mxu0 %v200
    %v264 = vpop.f32.mrf.mxu0
    %v265 = vadd.f32 0.0, %v264
    %266 = vmatmul.f32.gmra.mxu0 %v203
    %v267 = vpop.f32.mrf.mxu0
    %v268 = vadd.f32 0.0, %v267
    %269 = vmatmul.f32.gmra.mxu0 %v206
    %v270 = vpop.f32.mrf.mxu0
    %v271 = vadd.f32 0.0, %v270
    %272 = vmatmul.f32.gmra.mxu0 %v209
    %v273 = vpop.f32.mrf.mxu0
    %v274 = vadd.f32 0.0, %v273
    %275 = vmatmul.f32.gmra.mxu0 %v212
    %v276 = vpop.f32.mrf.mxu0
    %v277 = vadd.f32 0.0, %v276
    %278 = vmatmul.f32.gmra.mxu0 %v215
    %v279 = vpop.f32.mrf.mxu0
    %v280 = vadd.f32 0.0, %v279
    %281 = vmatmul.f32.gmra.mxu0 %v218
    %v282 = vpop.f32.mrf.mxu0
    %v283 = vadd.f32 0.0, %v282
    %284 = vmatmul.f32.gmra.mxu0 %v221
    %v285 = vpop.f32.mrf.mxu0
    %v286 = vadd.f32 0.0, %v285
    %287 = vmatmul.f32.gmra.mxu0 %v224
    %v288 = vpop.f32.mrf.mxu0
    %v289 = vadd.f32 0.0, %v288
    %290 = vmatmul.f32.gmra.mxu0 %v227
    %v291 = vpop.f32.mrf.mxu0
    %v292 = vadd.f32 0.0, %v291
    %293 = vmatmul.f32.gmra.mxu0 %v230
    %v294 = vpop.f32.mrf.mxu0
    %v295 = vadd.f32 0.0, %v294
    %296 = vmatmul.f32.gmra.mxu0 %v233
    %v297 = vpop.f32.mrf.mxu0
    %v298 = vadd.f32 0.0, %v297
    %299 = vmatmul.f32.gmra.mxu0 %v236
    %v300 = vpop.f32.mrf.mxu0
    %v301 = vadd.f32 0.0, %v300
    %302 = vmatmul.f32.gmra.mxu0 %v239
    %v303 = vpop.f32.mrf.mxu0
    %v304 = vadd.f32 0.0, %v303
    %305 = vdwg.mxu0
    %322 = vset.pattern.permute.xlu0 0
    %323 = vperm.xlu0 %322, %v259
    %v324 = vpop.permute.xlu0 %323
    %325 = vset.pattern.permute.xlu0 0
    %326 = vperm.xlu0 %325, %v262
    %v327 = vpop.permute.xlu0 %326
    %328 = vset.pattern.permute.xlu0 0
    %329 = vperm.xlu0 %328, %v265
    %v330 = vpop.permute.xlu0 %329
    %331 = vset.pattern.permute.xlu0 0
    %332 = vperm.xlu0 %331, %v268
    %v333 = vpop.permute.xlu0 %332
    %334 = vset.pattern.permute.xlu0 0
    %335 = vperm.xlu0 %334, %v271
    %v336 = vpop.permute.xlu0 %335
    %337 = vset.pattern.permute.xlu0 0
    %338 = vperm.xlu0 %337, %v274
    %v339 = vpop.permute.xlu0 %338
    %340 = vset.pattern.permute.xlu0 0
    %341 = vperm.xlu0 %340, %v277
    %v342 = vpop.permute.xlu0 %341
    %343 = vset.pattern.permute.xlu0 0
    %344 = vperm.xlu0 %343, %v280
    %v345 = vpop.permute.xlu0 %344
    %346 = vset.pattern.permute.xlu0 0
    %347 = vperm.xlu0 %346, %v283
    %v348 = vpop.permute.xlu0 %347
    %349 = vset.pattern.permute.xlu0 0
    %350 = vperm.xlu0 %349, %v286
    %v351 = vpop.permute.xlu0 %350
    %352 = vset.pattern.permute.xlu0 0
    %353 = vperm.xlu0 %352, %v289
    %v354 = vpop.permute.xlu0 %353
    %355 = vset.pattern.permute.xlu0 0
    %356 = vperm.xlu0 %355, %v292
    %v357 = vpop.permute.xlu0 %356
    %358 = vset.pattern.permute.xlu0 0
    %359 = vperm.xlu0 %358, %v295
    %v360 = vpop.permute.xlu0 %359
    %361 = vset.pattern.permute.xlu0 0
    %362 = vperm.xlu0 %361, %v298
    %v363 = vpop.permute.xlu0 %362
    %364 = vset.pattern.permute.xlu0 0
    %365 = vperm.xlu0 %364, %v301
    %v366 = vpop.permute.xlu0 %365
    %367 = vset.pattern.permute.xlu0 0
    %368 = vperm.xlu0 %367, %v304
    %v369 = vpop.permute.xlu0 %368
    %v370 = vlaneseq
    %v371 = vand.u32 %v370, 127
    %v372 = vperm.slane %v324, %v371
    %v373 = vperm.slane %v327, %v371
    %v374 = vperm.slane %v330, %v371
    %v375 = vperm.slane %v333, %v371
    %v376 = vperm.slane %v336, %v371
    %v377 = vperm.slane %v339, %v371
    %v378 = vperm.slane %v342, %v371
    %v379 = vperm.slane %v345, %v371
    %v380 = vperm.slane %v348, %v371
    %v381 = vperm.slane %v351, %v371
    %v382 = vperm.slane %v354, %v371
    %v383 = vperm.slane %v357, %v371
    %v384 = vperm.slane %v360, %v371
    %v385 = vperm.slane %v363, %v371
    %v386 = vperm.slane %v366, %v371
    %v387 = vperm.slane %v369, %v371
    %vm388 = vcmask 1041409
    %v389 = vsel %vm388, %v373, %v372
    %vm390 = vcmask 1042434
    %v391 = vsel %vm390, %v374, %v389
    %vm392 = vcmask 1043459
    %v393 = vsel %vm392, %v375, %v391
    %vm394 = vcmask 1044484
    %v395 = vsel %vm394, %v376, %v393
    %vm396 = vcmask 1045509
    %v397 = vsel %vm396, %v377, %v395
    %vm398 = vcmask 1046534
    %v399 = vsel %vm398, %v378, %v397
    %vm400 = vcmask 1047559
    %v401 = vsel %vm400, %v379, %v399
    %v402 = vsel %vm388, %v381, %v380
    %v403 = vsel %vm390, %v382, %v402
    %v404 = vsel %vm392, %v383, %v403
    %v405 = vsel %vm394, %v384, %v404
    %v406 = vsel %vm396, %v385, %v405
    %v407 = vsel %vm398, %v386, %v406
    %v408 = vsel %vm400, %v387, %v407
    %vm411 = vcmask 64512
    %v412 = vsel %vm411, %v401, -inf
    %413 = vmax.xlane.f32.xlu0 %v412
    %v414 = vpop.xlane.xlu0 %413
    %v415 = vsel %vm411, %v408, -inf
    %416 = vmax.xlane.f32.xlu0 %v415
    %v417 = vpop.xlane.xlu0 %416
    %v420 = vperm.slane %v414, 0
    %v421 = vperm.slane %v414, 1
    %v422 = vperm.slane %v414, 2
    %v423 = vperm.slane %v414, 3
    %v424 = vperm.slane %v414, 4
    %v425 = vperm.slane %v414, 5
    %v426 = vperm.slane %v414, 6
    %v427 = vperm.slane %v414, 7
    %v428 = vperm.slane %v417, 0
    %v429 = vperm.slane %v417, 1
    %v430 = vperm.slane %v417, 2
    %v431 = vperm.slane %v417, 3
    %v432 = vperm.slane %v417, 4
    %v433 = vperm.slane %v417, 5
    %v434 = vperm.slane %v417, 6
    %v435 = vperm.slane %v417, 7
    %v452 = vsub.f32 %v259, %v420
    %v453 = vsub.f32 %v262, %v421
    %v454 = vsub.f32 %v265, %v422
    %v455 = vsub.f32 %v268, %v423
    %v456 = vsub.f32 %v271, %v424
    %v457 = vsub.f32 %v274, %v425
    %v458 = vsub.f32 %v277, %v426
    %v459 = vsub.f32 %v280, %v427
    %v460 = vsub.f32 %v283, %v428
    %v461 = vsub.f32 %v286, %v429
    %v462 = vsub.f32 %v289, %v430
    %v463 = vsub.f32 %v292, %v431
    %v464 = vsub.f32 %v295, %v432
    %v465 = vsub.f32 %v298, %v433
    %v466 = vsub.f32 %v301, %v434
    %v467 = vsub.f32 %v304, %v435
    %v468 = vmul.f32 %v452, 1.442695
    %v469 = vpow.pop %v468
    %v470 = vmul.f32 %v453, 1.442695
    %v471 = vpow.pop %v470
    %v472 = vmul.f32 %v454, 1.442695
    %v473 = vpow.pop %v472
    %v474 = vmul.f32 %v455, 1.442695
    %v475 = vpow.pop %v474
    %v476 = vmul.f32 %v456, 1.442695
    %v477 = vpow.pop %v476
    %v478 = vmul.f32 %v457, 1.442695
    %v479 = vpow.pop %v478
    %v480 = vmul.f32 %v458, 1.442695
    %v481 = vpow.pop %v480
    %v482 = vmul.f32 %v459, 1.442695
    %v483 = vpow.pop %v482
    %v484 = vmul.f32 %v460, 1.442695
    %v485 = vpow.pop %v484
    %v486 = vmul.f32 %v461, 1.442695
    %v487 = vpow.pop %v486
    %v488 = vmul.f32 %v462, 1.442695
    %v489 = vpow.pop %v488
    %v490 = vmul.f32 %v463, 1.442695
    %v491 = vpow.pop %v490
    %v492 = vmul.f32 %v464, 1.442695
    %v493 = vpow.pop %v492
    %v494 = vmul.f32 %v465, 1.442695
    %v495 = vpow.pop %v494
    %v496 = vmul.f32 %v466, 1.442695
    %v497 = vpow.pop %v496
    %v498 = vmul.f32 %v467, 1.442695
    %v499 = vpow.pop %v498
    %516 = vset.pattern.permute.xlu0 0
    %517 = vperm.xlu0 %516, %v469
    %v518 = vpop.permute.xlu0 %517
    %519 = vset.pattern.permute.xlu0 0
    %520 = vperm.xlu0 %519, %v471
    %v521 = vpop.permute.xlu0 %520
    %522 = vset.pattern.permute.xlu0 0
    %523 = vperm.xlu0 %522, %v473
    %v524 = vpop.permute.xlu0 %523
    %525 = vset.pattern.permute.xlu0 0
    %526 = vperm.xlu0 %525, %v475
    %v527 = vpop.permute.xlu0 %526
    %528 = vset.pattern.permute.xlu0 0
    %529 = vperm.xlu0 %528, %v477
    %v530 = vpop.permute.xlu0 %529
    %531 = vset.pattern.permute.xlu0 0
    %532 = vperm.xlu0 %531, %v479
    %v533 = vpop.permute.xlu0 %532
    %534 = vset.pattern.permute.xlu0 0
    %535 = vperm.xlu0 %534, %v481
    %v536 = vpop.permute.xlu0 %535
    %537 = vset.pattern.permute.xlu0 0
    %538 = vperm.xlu0 %537, %v483
    %v539 = vpop.permute.xlu0 %538
    %540 = vset.pattern.permute.xlu0 0
    %541 = vperm.xlu0 %540, %v485
    %v542 = vpop.permute.xlu0 %541
    %543 = vset.pattern.permute.xlu0 0
    %544 = vperm.xlu0 %543, %v487
    %v545 = vpop.permute.xlu0 %544
    %546 = vset.pattern.permute.xlu0 0
    %547 = vperm.xlu0 %546, %v489
    %v548 = vpop.permute.xlu0 %547
    %549 = vset.pattern.permute.xlu0 0
    %550 = vperm.xlu0 %549, %v491
    %v551 = vpop.permute.xlu0 %550
    %552 = vset.pattern.permute.xlu0 0
    %553 = vperm.xlu0 %552, %v493
    %v554 = vpop.permute.xlu0 %553
    %555 = vset.pattern.permute.xlu0 0
    %556 = vperm.xlu0 %555, %v495
    %v557 = vpop.permute.xlu0 %556
    %558 = vset.pattern.permute.xlu0 0
    %559 = vperm.xlu0 %558, %v497
    %v560 = vpop.permute.xlu0 %559
    %561 = vset.pattern.permute.xlu0 0
    %562 = vperm.xlu0 %561, %v499
    %v563 = vpop.permute.xlu0 %562
    %v564 = vperm.slane %v518, %v371
    %v565 = vperm.slane %v521, %v371
    %v566 = vperm.slane %v524, %v371
    %v567 = vperm.slane %v527, %v371
    %v568 = vperm.slane %v530, %v371
    %v569 = vperm.slane %v533, %v371
    %v570 = vperm.slane %v536, %v371
    %v571 = vperm.slane %v539, %v371
    %v572 = vperm.slane %v542, %v371
    %v573 = vperm.slane %v545, %v371
    %v574 = vperm.slane %v548, %v371
    %v575 = vperm.slane %v551, %v371
    %v576 = vperm.slane %v554, %v371
    %v577 = vperm.slane %v557, %v371
    %v578 = vperm.slane %v560, %v371
    %v579 = vperm.slane %v563, %v371
    %v580 = vsel %vm388, %v565, %v564
    %v581 = vsel %vm390, %v566, %v580
    %v582 = vsel %vm392, %v567, %v581
    %v583 = vsel %vm394, %v568, %v582
    %v584 = vsel %vm396, %v569, %v583
    %v585 = vsel %vm398, %v570, %v584
    %v586 = vsel %vm400, %v571, %v585
    %v587 = vsel %vm388, %v573, %v572
    %v588 = vsel %vm390, %v574, %v587
    %v589 = vsel %vm392, %v575, %v588
    %v590 = vsel %vm394, %v576, %v589
    %v591 = vsel %vm396, %v577, %v590
    %v592 = vsel %vm398, %v578, %v591
    %v593 = vsel %vm400, %v579, %v592
    %v596 = vsel %vm411, %v586, 0.0
    %597 = vadd.xlane.f32.xlu0 %v596
    %v598 = vpop.xlane.xlu0 %597
    %v599 = vsel %vm411, %v593, 0.0
    %600 = vadd.xlane.f32.xlu0 %v599
    %v601 = vpop.xlane.xlu0 %600
    %v602 = vrcp.pop %v598
    %v603 = vrcp.pop %v601
    %v604 = vmul.f32 %v598, %v602
    %v605 = vmul.f32 %v601, %v603
    %v606 = vsub.f32 2.0, %v604
    %v607 = vsub.f32 2.0, %v605
    %v608 = vmul.f32 %v602, %v606
    %v609 = vmul.f32 %v603, %v607
    %v612 = vperm.slane %v608, 0
    %v613 = vperm.slane %v608, 1
    %v614 = vperm.slane %v608, 2
    %v615 = vperm.slane %v608, 3
    %v616 = vperm.slane %v608, 4
    %v617 = vperm.slane %v608, 5
    %v618 = vperm.slane %v608, 6
    %v619 = vperm.slane %v608, 7
    %v620 = vperm.slane %v609, 0
    %v621 = vperm.slane %v609, 1
    %v622 = vperm.slane %v609, 2
    %v623 = vperm.slane %v609, 3
    %v624 = vperm.slane %v609, 4
    %v625 = vperm.slane %v609, 5
    %v626 = vperm.slane %v609, 6
    %v627 = vperm.slane %v609, 7
    %v644 = vmul.f32 %v469, %v612
    %v645 = vmul.f32 %v471, %v613
    %v646 = vmul.f32 %v473, %v614
    %v647 = vmul.f32 %v475, %v615
    %v648 = vmul.f32 %v477, %v616
    %v649 = vmul.f32 %v479, %v617
    %v650 = vmul.f32 %v481, %v618
    %v651 = vmul.f32 %v483, %v619
    %v652 = vmul.f32 %v485, %v620
    %v653 = vmul.f32 %v487, %v621
    %v654 = vmul.f32 %v489, %v622
    %v655 = vmul.f32 %v491, %v623
    %v656 = vmul.f32 %v493, %v624
    %v657 = vmul.f32 %v495, %v625
    %v658 = vmul.f32 %v497, %v626
    %v659 = vmul.f32 %v499, %v627
    %676 = vset.pattern.permute.xlu0 0
    %677 = vperm.xlu0 %676, %v644
    %v678 = vpop.permute.xlu0 %677
    %679 = vset.pattern.permute.xlu0 0
    %680 = vperm.xlu0 %679, %v645
    %v681 = vpop.permute.xlu0 %680
    %682 = vset.pattern.permute.xlu0 0
    %683 = vperm.xlu0 %682, %v646
    %v684 = vpop.permute.xlu0 %683
    %685 = vset.pattern.permute.xlu0 0
    %686 = vperm.xlu0 %685, %v647
    %v687 = vpop.permute.xlu0 %686
    %688 = vset.pattern.permute.xlu0 0
    %689 = vperm.xlu0 %688, %v648
    %v690 = vpop.permute.xlu0 %689
    %691 = vset.pattern.permute.xlu0 0
    %692 = vperm.xlu0 %691, %v649
    %v693 = vpop.permute.xlu0 %692
    %694 = vset.pattern.permute.xlu0 0
    %695 = vperm.xlu0 %694, %v650
    %v696 = vpop.permute.xlu0 %695
    %697 = vset.pattern.permute.xlu0 0
    %698 = vperm.xlu0 %697, %v651
    %v699 = vpop.permute.xlu0 %698
    %700 = vset.pattern.permute.xlu0 0
    %701 = vperm.xlu0 %700, %v652
    %v702 = vpop.permute.xlu0 %701
    %703 = vset.pattern.permute.xlu0 0
    %704 = vperm.xlu0 %703, %v653
    %v705 = vpop.permute.xlu0 %704
    %706 = vset.pattern.permute.xlu0 0
    %707 = vperm.xlu0 %706, %v654
    %v708 = vpop.permute.xlu0 %707
    %709 = vset.pattern.permute.xlu0 0
    %710 = vperm.xlu0 %709, %v655
    %v711 = vpop.permute.xlu0 %710
    %712 = vset.pattern.permute.xlu0 0
    %713 = vperm.xlu0 %712, %v656
    %v714 = vpop.permute.xlu0 %713
    %715 = vset.pattern.permute.xlu0 0
    %716 = vperm.xlu0 %715, %v657
    %v717 = vpop.permute.xlu0 %716
    %718 = vset.pattern.permute.xlu0 0
    %719 = vperm.xlu0 %718, %v658
    %v720 = vpop.permute.xlu0 %719
    %721 = vset.pattern.permute.xlu0 0
    %722 = vperm.xlu0 %721, %v659
    %v723 = vpop.permute.xlu0 %722
    %v724 = vperm.slane %v678, %v371
    %v725 = vperm.slane %v681, %v371
    %v726 = vperm.slane %v684, %v371
    %v727 = vperm.slane %v687, %v371
    %v728 = vperm.slane %v690, %v371
    %v729 = vperm.slane %v693, %v371
    %v730 = vperm.slane %v696, %v371
    %v731 = vperm.slane %v699, %v371
    %v732 = vperm.slane %v702, %v371
    %v733 = vperm.slane %v705, %v371
    %v734 = vperm.slane %v708, %v371
    %v735 = vperm.slane %v711, %v371
    %v736 = vperm.slane %v714, %v371
    %v737 = vperm.slane %v717, %v371
    %v738 = vperm.slane %v720, %v371
    %v739 = vperm.slane %v723, %v371
    %v740 = vsel %vm388, %v725, %v724
    %v741 = vsel %vm390, %v726, %v740
    %v742 = vsel %vm392, %v727, %v741
    %v743 = vsel %vm394, %v728, %v742
    %v744 = vsel %vm396, %v729, %v743
    %v745 = vsel %vm398, %v730, %v744
    %v746 = vsel %vm400, %v731, %v745
    %v747 = vsel %vm388, %v733, %v732
    %v748 = vsel %vm390, %v734, %v747
    %v749 = vsel %vm392, %v735, %v748
    %v750 = vsel %vm394, %v736, %v749
    %v751 = vsel %vm396, %v737, %v750
    %v752 = vsel %vm398, %v738, %v751
    %v753 = vsel %vm400, %v739, %v752
    %756 = vst.msk [vmem:[%s5] sm:$0xff] %vm411, %v746
    %757 = vst.msk [vmem:[%s5 + $0x8] sm:$0xff] %vm411, %v753
    %v774 = vmul.f32 %v36, %v678
    %v775 = vmul.f32 %v37, %v681
    %v776 = vmul.f32 %v38, %v684
    %v777 = vmul.f32 %v39, %v687
    %v778 = vmul.f32 %v40, %v690
    %v779 = vmul.f32 %v41, %v693
    %v780 = vmul.f32 %v42, %v696
    %v781 = vmul.f32 %v43, %v699
    %v782 = vmul.f32 %v44, %v702
    %v783 = vmul.f32 %v45, %v705
    %v784 = vmul.f32 %v46, %v708
    %v785 = vmul.f32 %v47, %v711
    %v786 = vmul.f32 %v48, %v714
    %v787 = vmul.f32 %v49, %v717
    %v788 = vmul.f32 %v50, %v720
    %v789 = vmul.f32 %v51, %v723
    %v790 = vsel %vm60, %v774, 0.0
    %v791 = vrot.slane %v790, 4
    %v792 = vadd.f32 %v790, %v791
    %v793 = vrot.slane %v792, 2
    %v794 = vadd.f32 %v792, %v793
    %v795 = vrot.slane %v794, 1
    %v796 = vadd.f32 %v794, %v795
    %v797 = vsel %vm60, %v775, 0.0
    %v798 = vrot.slane %v797, 4
    %v799 = vadd.f32 %v797, %v798
    %v800 = vrot.slane %v799, 2
    %v801 = vadd.f32 %v799, %v800
    %v802 = vrot.slane %v801, 1
    %v803 = vadd.f32 %v801, %v802
    %v804 = vsel %vm60, %v776, 0.0
    %v805 = vrot.slane %v804, 4
    %v806 = vadd.f32 %v804, %v805
    %v807 = vrot.slane %v806, 2
    %v808 = vadd.f32 %v806, %v807
    %v809 = vrot.slane %v808, 1
    %v810 = vadd.f32 %v808, %v809
    %v811 = vsel %vm60, %v777, 0.0
    %v812 = vrot.slane %v811, 4
    %v813 = vadd.f32 %v811, %v812
    %v814 = vrot.slane %v813, 2
    %v815 = vadd.f32 %v813, %v814
    %v816 = vrot.slane %v815, 1
    %v817 = vadd.f32 %v815, %v816
    %v818 = vsel %vm60, %v778, 0.0
    %v819 = vrot.slane %v818, 4
    %v820 = vadd.f32 %v818, %v819
    %v821 = vrot.slane %v820, 2
    %v822 = vadd.f32 %v820, %v821
    %v823 = vrot.slane %v822, 1
    %v824 = vadd.f32 %v822, %v823
    %v825 = vsel %vm60, %v779, 0.0
    %v826 = vrot.slane %v825, 4
    %v827 = vadd.f32 %v825, %v826
    %v828 = vrot.slane %v827, 2
    %v829 = vadd.f32 %v827, %v828
    %v830 = vrot.slane %v829, 1
    %v831 = vadd.f32 %v829, %v830
    %v832 = vsel %vm60, %v780, 0.0
    %v833 = vrot.slane %v832, 4
    %v834 = vadd.f32 %v832, %v833
    %v835 = vrot.slane %v834, 2
    %v836 = vadd.f32 %v834, %v835
    %v837 = vrot.slane %v836, 1
    %v838 = vadd.f32 %v836, %v837
    %v839 = vsel %vm60, %v781, 0.0
    %v840 = vrot.slane %v839, 4
    %v841 = vadd.f32 %v839, %v840
    %v842 = vrot.slane %v841, 2
    %v843 = vadd.f32 %v841, %v842
    %v844 = vrot.slane %v843, 1
    %v845 = vadd.f32 %v843, %v844
    %v846 = vsel %vm60, %v782, 0.0
    %v847 = vrot.slane %v846, 4
    %v848 = vadd.f32 %v846, %v847
    %v849 = vrot.slane %v848, 2
    %v850 = vadd.f32 %v848, %v849
    %v851 = vrot.slane %v850, 1
    %v852 = vadd.f32 %v850, %v851
    %v853 = vsel %vm60, %v783, 0.0
    %v854 = vrot.slane %v853, 4
    %v855 = vadd.f32 %v853, %v854
    %v856 = vrot.slane %v855, 2
    %v857 = vadd.f32 %v855, %v856
    %v858 = vrot.slane %v857, 1
    %v859 = vadd.f32 %v857, %v858
    %v860 = vsel %vm60, %v784, 0.0
    %v861 = vrot.slane %v860, 4
    %v862 = vadd.f32 %v860, %v861
    %v863 = vrot.slane %v862, 2
    %v864 = vadd.f32 %v862, %v863
    %v865 = vrot.slane %v864, 1
    %v866 = vadd.f32 %v864, %v865
    %v867 = vsel %vm60, %v785, 0.0
    %v868 = vrot.slane %v867, 4
    %v869 = vadd.f32 %v867, %v868
    %v870 = vrot.slane %v869, 2
    %v871 = vadd.f32 %v869, %v870
    %v872 = vrot.slane %v871, 1
    %v873 = vadd.f32 %v871, %v872
    %v874 = vsel %vm60, %v786, 0.0
    %v875 = vrot.slane %v874, 4
    %v876 = vadd.f32 %v874, %v875
    %v877 = vrot.slane %v876, 2
    %v878 = vadd.f32 %v876, %v877
    %v879 = vrot.slane %v878, 1
    %v880 = vadd.f32 %v878, %v879
    %v881 = vsel %vm60, %v787, 0.0
    %v882 = vrot.slane %v881, 4
    %v883 = vadd.f32 %v881, %v882
    %v884 = vrot.slane %v883, 2
    %v885 = vadd.f32 %v883, %v884
    %v886 = vrot.slane %v885, 1
    %v887 = vadd.f32 %v885, %v886
    %v888 = vsel %vm60, %v788, 0.0
    %v889 = vrot.slane %v888, 4
    %v890 = vadd.f32 %v888, %v889
    %v891 = vrot.slane %v890, 2
    %v892 = vadd.f32 %v890, %v891
    %v893 = vrot.slane %v892, 1
    %v894 = vadd.f32 %v892, %v893
    %v895 = vsel %vm60, %v789, 0.0
    %v896 = vrot.slane %v895, 4
    %v897 = vadd.f32 %v895, %v896
    %v898 = vrot.slane %v897, 2
    %v899 = vadd.f32 %v897, %v898
    %v900 = vrot.slane %v899, 1
    %v901 = vadd.f32 %v899, %v900
    %v918 = vsel %vm388, %v803, %v796
    %v919 = vsel %vm390, %v810, %v918
    %v920 = vsel %vm392, %v817, %v919
    %v921 = vsel %vm394, %v824, %v920
    %v922 = vsel %vm396, %v831, %v921
    %v923 = vsel %vm398, %v838, %v922
    %v924 = vsel %vm400, %v845, %v923
    %v925 = vsel %vm388, %v859, %v852
    %v926 = vsel %vm390, %v866, %v925
    %v927 = vsel %vm392, %v873, %v926
    %v928 = vsel %vm394, %v880, %v927
    %v929 = vsel %vm396, %v887, %v928
    %v930 = vsel %vm398, %v894, %v929
    %v931 = vsel %vm400, %v901, %v930
    %934 = vst.msk [vmem:[#allocation5] sm:$0xff] %vm60, %v924
    %935 = vst.msk [vmem:[#allocation5 + $0x8] sm:$0xff] %vm60, %v931
    // Predicated region
    $region22: #{tpu_custom_call.1} parent=1 // pred_check
      _
    $region23: #{tpu_custom_call.1} parent=1 // pred_check_branch
      %937 = sbr.rel (0) target = $region25
    $region24: #{tpu_custom_call.1} parent=1 // pred_region
      %939 = vsyncadd [#allocation4], 0
      %s940 = sshll.u32 [#allocation5], 4
      %s941 = int_to_ptr.vmem [resolvable:$true] %s940
      %s942 = sshll.u32 %s4, 4
      %s943 = int_to_ptr.hbm [resolvable:$true] %s942
      %948 = dma.vmem_to_hbm [thread:$0]  %s941, 256, %s943, [#allocation4], 128, 128, 8
    $region25: #{tpu_custom_call.1} parent=1 // pred_fallthru
      _
    // Predicated region
    $region26: #{tpu_custom_call.1} parent=1 // pred_check
      _
    $region27: #{tpu_custom_call.1} parent=1 // pred_check_branch
      %950 = sbr.rel (0) target = $region29
    $region28: #{tpu_custom_call.1} parent=1 // pred_region
      _
    $region29: #{tpu_custom_call.1} parent=1 // pred_fallthru
      _
    // Predicated region
    $region30: #{tpu_custom_call.1} parent=1 // pred_check
      _
    $region31: #{tpu_custom_call.1} parent=1 // pred_check_branch
      %952 = sbr.rel (0) target = $region33
    $region32: #{tpu_custom_call.1} parent=1 // pred_region
      %954 = dma.done [#allocation4], 256
    $region33: #{tpu_custom_call.1} parent=1 // pred_fallthru
      _
    // Predicated region
    $region34: #{tpu_custom_call.1} parent=1 // pred_check
      _
    $region35: #{tpu_custom_call.1} parent=1 // pred_check_branch
      %956 = sbr.rel (0) target = $region37
    $region36: #{tpu_custom_call.1} parent=1 // pred_region
      _
    $region37: #{tpu_custom_call.1} parent=1 // pred_fallthru
      _
    %957 = vsyncpa [#allocation3], 1
    %958 = vsyncpa [#allocation4], 1

</llo_original>
